<compile_context>
chip_gen: v5e
topology: v5e:2x2
jax: 0.10.0
libtpu: 0.0.40
codegen_flags: <defaults>
</compile_context>

<pallas_src>
import functools

import jax
import jax.numpy as jnp
from jax.experimental import pallas as pl
from jax.experimental.pallas import tpu as pltpu

_SUBLANE = 8


def _round_up(x, m):
    return (x + m - 1) // m * m


def _fused_autoencoder_kernel(*refs, n_layers, n_enc, cast_lhs):
    """Fused encoder+decoder over one batch tile.

    refs layout (inputs then outputs, positional):
      x_ref,
      w0, b0, w1, b1, ..., w_{L-1}, b_{L-1},
      encode_ref, decode_ref
    Layer li computes y = h @ w + b; ReLU for all layers except the last, which
    uses Sigmoid.  The activation after layer (n_enc - 1) is the encoder output.
    """
    x_ref = refs[0]
    wb_refs = refs[1 : 1 + 2 * n_layers]
    enc_ref = refs[1 + 2 * n_layers]
    dec_ref = refs[2 + 2 * n_layers]

    h = x_ref[...]
    for li in range(n_layers):
        w = wb_refs[2 * li][...]
        b = wb_refs[2 * li + 1][...]  # (1, f_out) broadcasts over the batch tile
        lhs = h.astype(w.dtype) if cast_lhs else h
        y = jnp.dot(lhs, w, preferred_element_type=jnp.float32) + b
        if li < n_layers - 1:
            h = jnp.maximum(y, 0.0)  # ReLU
        else:
            # Numerically stable sigmoid: never exponentiates a positive number.
            e = jnp.exp(-jnp.abs(y))
            inv = 1.0 / (1.0 + e)
            h = jnp.where(y >= 0, inv, e * inv)
        if li == n_enc - 1:
            enc_ref[...] = h.astype(enc_ref.dtype)
    dec_ref[...] = h.astype(dec_ref.dtype)


def _derive_batch_tiling(B, act_row_bytes, resident_bytes, *, max_tile=8192, min_split=512):
    """Pick (batch_tile, padded_batch) with padded_batch % batch_tile == 0.

    * Tile as large as the VMEM budget allows (double-buffered x/enc/dec tiles
      plus the resident weight/bias copies) to amortize per-grid-step overhead.
    * Force >= 2 grid steps once each tile can stay >= min_split rows, so the
      "parallel" batch axis can split across v7x's two TensorCores.
    * Prefer a tile that divides the 8-row-aligned batch exactly so the wrapper
      avoids jnp.pad / output slicing (extra HBM passes).
    """
    bp8 = _round_up(max(B, 1), _SUBLANE)

    # Conservative scoped-VMEM budget (default scoped limit is 16-32 MiB; v7x
    # physical VMEM is 64 MiB).  Weights/biases get 2 pipeline buffers even
    # though they are fetched only once (constant index_map).
    budget = 24 * 1024 * 1024 - 2 * resident_bytes
    budget = max(budget, 4 * 1024 * 1024)
    cap = budget // (2 * act_row_bytes)  # x/enc/dec tiles are double-buffered
    cap = max(_SUBLANE, min(max_tile, cap // _SUBLANE * _SUBLANE))

    upper = min(cap, bp8)
    if bp8 >= 2 * min_split:
        upper = min(upper, (bp8 // 2) // _SUBLANE * _SUBLANE)
    upper = max(upper, _SUBLANE)
    floor = max(_SUBLANE, (upper // 2) // _SUBLANE * _SUBLANE)

    tb = None
    for cand in range(upper, floor - 1, -_SUBLANE):
        if bp8 % cand == 0:
            tb = cand
            break
    if tb is None:
        tb = upper  # rare: accept a padded (ragged) final tile
    return tb, _round_up(B, tb)


def autoencoder_forward(params, x, *, matmul_dtype=None):
    """Single fused pallas_call over the whole autoencoder.

    params: {"encoder": [(w, b), ...], "decoder": [(w, b), ...]} with w stored
            pre-transposed as (f_in, f_out).
    x: (B, config[0]) float32.
    Returns (encode, decode), matching the PyTorch module.
    """
    enc_layers = params["encoder"]
    dec_layers = params["decoder"]
    layers = enc_layers + dec_layers
    n_layers = len(layers)
    n_enc = len(enc_layers)

    B, f_in = x.shape
    enc_dim = enc_layers[-1][0].shape[1]
    out_dim = dec_layers[-1][0].shape[1]

    # bf16 matmul operands only once layers are wide enough for weight-DMA / MXU
    # throughput to matter; f32 stays bit-exact at toy widths.  Only the matmul
    # operands change dtype — bias add and activations remain f32 (v5e-safe).
    if matmul_dtype is None:
        widest = max(max(w.shape) for (w, _) in layers)
        matmul_dtype = jnp.bfloat16 if widest >= 1024 else jnp.float32
    cast_lhs = jnp.dtype(matmul_dtype) != jnp.dtype(jnp.float32)

    weight_nbytes = sum(
        w.size * jnp.dtype(matmul_dtype).itemsize + b.size * 4 for (w, b) in layers
    )
    act_row_bytes = 4 * (f_in + enc_dim + out_dim)
    tb, bp = _derive_batch_tiling(B, act_row_bytes, weight_nbytes)

    if bp != B:
        x = jnp.pad(x, ((0, bp - B), (0, 0)))
    grid = (bp // tb,)

    # x / outputs tiled over batch; weights & biases resident (constant index_map
    # -> fetched once for the whole grid).
    in_specs = [pl.BlockSpec((tb, f_in), lambda i: (i, 0))]
    flat_inputs = [x]
    for (w, b) in layers:
        fi, fo = w.shape
        in_specs.append(pl.BlockSpec((fi, fo), lambda i: (0, 0)))
        in_specs.append(pl.BlockSpec((1, fo), lambda i: (0, 0)))
        flat_inputs.append(w.astype(matmul_dtype))
        flat_inputs.append(b.reshape(1, fo).astype(jnp.float32))

    out_specs = [
        pl.BlockSpec((tb, enc_dim), lambda i: (i, 0)),
        pl.BlockSpec((tb, out_dim), lambda i: (i, 0)),
    ]
    out_shape = [
        jax.ShapeDtypeStruct((bp, enc_dim), jnp.float32),
        jax.ShapeDtypeStruct((bp, out_dim), jnp.float32),
    ]

    # Double-buffered activation tiles + 2 pipeline copies of resident weights.
    vmem_est = 2 * tb * act_row_bytes + 2 * weight_nbytes + (1 << 20)
    vmem_limit = int(min(64 << 20, max(32 << 20, vmem_est + vmem_est // 4)))

    kernel = functools.partial(
        _fused_autoencoder_kernel, n_layers=n_layers, n_enc=n_enc, cast_lhs=cast_lhs
    )

    encode, decode = pl.pallas_call(
        kernel,
        out_shape=out_shape,
        grid=grid,
        in_specs=in_specs,
        out_specs=out_specs,
        compiler_params=pltpu.CompilerParams(
            # Batch tiles are independent -> shard across TCs on v7x; no-op on
            # single-TC v5e/v6e.
            dimension_semantics=("parallel",),
            vmem_limit_bytes=vmem_limit,
        ),
    )(*flat_inputs)

    if bp != B:
        encode = encode[:B]
        decode = decode[:B]
    return encode, decode


def init_linear_params(key, f_in, f_out):
    """Deterministic init mimicking PyTorch nn.Linear default (uniform +-1/sqrt(f_in)).

    Weight is stored already transposed as (f_in, f_out)."""
    kw, kb = jax.random.split(key)
    bound = 1.0 / jnp.sqrt(jnp.float32(f_in))
    w = jax.random.uniform(kw, (f_in, f_out), jnp.float32, -bound, bound)
    b = jax.random.uniform(kb, (f_out,), jnp.float32, -bound, bound)
    return w, b


def build_autoencoder_params(config, key):
    """config: list of layer widths, like the PyTorch module."""
    params = {"encoder": [], "decoder": []}
    keys = jax.random.split(key, 2 * (len(config) - 1))
    k = 0
    # Encoder: Linear(config[i-1], config[i]) + ReLU for i in 1..len-1
    for i in range(1, len(config)):
        params["encoder"].append(init_linear_params(keys[k], config[i - 1], config[i]))
        k += 1
    # Decoder: Linear(config[i], config[i-1]) + ReLU for i in len-1..2,
    # then Linear(config[1], config[0]) + Sigmoid
    for i in range(len(config) - 1, 1, -1):
        params["decoder"].append(init_linear_params(keys[k], config[i], config[i - 1]))
        k += 1
    params["decoder"].append(init_linear_params(keys[k], config[1], config[0]))
    return params


def _reference(params, x):
    h = x
    for (w, b) in params["encoder"]:
        h = jnp.maximum(h @ w + b, 0.0)
    enc = h
    for (w, b) in params["decoder"][:-1]:
        h = jnp.maximum(h @ w + b, 0.0)
    w, b = params["decoder"][-1]
    return enc, jax.nn.sigmoid(h @ w + b)


if __name__ == "__main__":
    # Small shapes consistent with the module: config = [64, 32, 16], batch = 8.
    config = [64, 32, 16]
    batch = 8

    key = jax.random.PRNGKey(0)
    k_params, k_x = jax.random.split(key)
    params = build_autoencoder_params(config, k_params)

    x = jax.random.uniform(k_x, (batch, config[0]), jnp.float32)
    encode, decode = autoencoder_forward(params, x)
    jax.block_until_ready((encode, decode))

    assert encode.shape == (batch, config[-1])
    assert decode.shape == (batch, config[0])
    assert bool(jnp.all(encode >= 0.0))
    assert bool(jnp.all((decode >= 0.0) & (decode <= 1.0)))
    enc_ref, dec_ref = _reference(params, x)
    assert bool(jnp.allclose(encode, enc_ref, atol=1e-5, rtol=1e-5))
    assert bool(jnp.allclose(decode, dec_ref, atol=1e-5, rtol=1e-5))

    # Modestly larger batch to exercise the multi-tile path (grid > 1, tile chosen
    # to divide the batch so no pad/slice is emitted).
    x_big = jax.random.uniform(jax.random.PRNGKey(1), (1032, config[0]), jnp.float32)
    encode_b, decode_b = autoencoder_forward(params, x_big)
    jax.block_until_ready((encode_b, decode_b))
    assert encode_b.shape == (1032, config[-1])
    assert decode_b.shape == (1032, config[0])
    enc_ref_b, dec_ref_b = _reference(params, x_big)
    assert bool(jnp.allclose(encode_b, enc_ref_b, atol=1e-5, rtol=1e-5))
    assert bool(jnp.allclose(decode_b, dec_ref_b, atol=1e-5, rtol=1e-5))

    print("KERNEL_OK")
</pallas_src>

<mosaic_0001>
module attributes {stable_mosaic.version = 11 : i64} {
  func.func @_fused_autoencoder_kernel(%arg0: i32, %arg1: memref<8x64xf32, #tpu.memory_space<vmem>>, %arg2: memref<64x32xf32, #tpu.memory_space<vmem>>, %arg3: memref<1x32xf32, #tpu.memory_space<vmem>>, %arg4: memref<32x16xf32, #tpu.memory_space<vmem>>, %arg5: memref<1x16xf32, #tpu.memory_space<vmem>>, %arg6: memref<16x32xf32, #tpu.memory_space<vmem>>, %arg7: memref<1x32xf32, #tpu.memory_space<vmem>>, %arg8: memref<32x64xf32, #tpu.memory_space<vmem>>, %arg9: memref<1x64xf32, #tpu.memory_space<vmem>>, %arg10: memref<8x16xf32, #tpu.memory_space<vmem>>, %arg11: memref<8x64xf32, #tpu.memory_space<vmem>>) attributes {dimension_semantics = [#tpu.dimension_semantics<parallel>], iteration_bounds = array<i64: 1>, scalar_prefetch = 0 : i64, scratch_operands = 0 : i64, tpu.core_type = #tpu.core_type<tc>, window_params = [{transform_indices = @transform_0, window_bounds = array<i64: 8, 64>}, {pipeline_mode = #tpu.pipeline_mode<synchronous>, transform_indices = @transform_1, window_bounds = array<i64: 64, 32>}, {pipeline_mode = #tpu.pipeline_mode<synchronous>, transform_indices = @transform_2, window_bounds = array<i64: 1, 32>}, {pipeline_mode = #tpu.pipeline_mode<synchronous>, transform_indices = @transform_3, window_bounds = array<i64: 32, 16>}, {pipeline_mode = #tpu.pipeline_mode<synchronous>, transform_indices = @transform_4, window_bounds = array<i64: 1, 16>}, {pipeline_mode = #tpu.pipeline_mode<synchronous>, transform_indices = @transform_5, window_bounds = array<i64: 16, 32>}, {pipeline_mode = #tpu.pipeline_mode<synchronous>, transform_indices = @transform_6, window_bounds = array<i64: 1, 32>}, {pipeline_mode = #tpu.pipeline_mode<synchronous>, transform_indices = @transform_7, window_bounds = array<i64: 32, 64>}, {pipeline_mode = #tpu.pipeline_mode<synchronous>, transform_indices = @transform_8, window_bounds = array<i64: 1, 64>}, {transform_indices = @transform_9, window_bounds = array<i64: 8, 16>}, {transform_indices = @transform_10, window_bounds = array<i64: 8, 64>}]} {
    %c0 = arith.constant 0 : index
    %c0_0 = arith.constant 0 : index
    %0 = vector.load %arg1[%c0, %c0_0] : memref<8x64xf32, #tpu.memory_space<vmem>>, vector<8x64xf32>
    %c0_1 = arith.constant 0 : index
    %c0_2 = arith.constant 0 : index
    %1 = vector.load %arg2[%c0_1, %c0_2] : memref<64x32xf32, #tpu.memory_space<vmem>>, vector<64x32xf32>
    %c0_3 = arith.constant 0 : index
    %c0_4 = arith.constant 0 : index
    %2 = vector.load %arg3[%c0_3, %c0_4] : memref<1x32xf32, #tpu.memory_space<vmem>>, vector<1x32xf32>
    %cst = arith.constant dense<0.000000e+00> : vector<8x32xf32>
    %3 = tpu.matmul %0, %1, %cst {dimension_numbers = #tpu.dot_dimension_numbers<[1], [0], [0], [1], [0, 0, 1, 1], [], []>} : vector<8x64xf32>, vector<64x32xf32>, vector<8x32xf32> -> vector<8x32xf32>
    %4 = vector.broadcast %2 : vector<1x32xf32> to vector<8x32xf32>
    %5 = arith.addf %3, %4 : vector<8x32xf32>
    %cst_5 = arith.constant 0.000000e+00 : f32
    %6 = vector.broadcast %cst_5 : f32 to vector<8x32xf32>
    %7 = arith.maximumf %5, %6 : vector<8x32xf32>
    %c0_6 = arith.constant 0 : index
    %c0_7 = arith.constant 0 : index
    %8 = vector.load %arg4[%c0_6, %c0_7] : memref<32x16xf32, #tpu.memory_space<vmem>>, vector<32x16xf32>
    %c0_8 = arith.constant 0 : index
    %c0_9 = arith.constant 0 : index
    %9 = vector.load %arg5[%c0_8, %c0_9] : memref<1x16xf32, #tpu.memory_space<vmem>>, vector<1x16xf32>
    %cst_10 = arith.constant dense<0.000000e+00> : vector<8x16xf32>
    %10 = tpu.matmul %7, %8, %cst_10 {dimension_numbers = #tpu.dot_dimension_numbers<[1], [0], [0], [1], [0, 0, 1, 1], [], []>} : vector<8x32xf32>, vector<32x16xf32>, vector<8x16xf32> -> vector<8x16xf32>
    %11 = vector.broadcast %9 : vector<1x16xf32> to vector<8x16xf32>
    %12 = arith.addf %10, %11 : vector<8x16xf32>
    %cst_11 = arith.constant 0.000000e+00 : f32
    %13 = vector.broadcast %cst_11 : f32 to vector<8x16xf32>
    %14 = arith.maximumf %12, %13 : vector<8x16xf32>
    %c0_12 = arith.constant 0 : index
    %c0_13 = arith.constant 0 : index
    %15 = vector.load %arg10[%c0_12, %c0_13] : memref<8x16xf32, #tpu.memory_space<vmem>>, vector<8x16xf32>
    tpu.vector_store %arg10[%c0_12, %c0_13], %14 {strides = array<i32>} : memref<8x16xf32, #tpu.memory_space<vmem>>, vector<8x16xf32>,
    %c0_14 = arith.constant 0 : index
    %c0_15 = arith.constant 0 : index
    %16 = vector.load %arg6[%c0_14, %c0_15] : memref<16x32xf32, #tpu.memory_space<vmem>>, vector<16x32xf32>
    %c0_16 = arith.constant 0 : index
    %c0_17 = arith.constant 0 : index
    %17 = vector.load %arg7[%c0_16, %c0_17] : memref<1x32xf32, #tpu.memory_space<vmem>>, vector<1x32xf32>
    %cst_18 = arith.constant dense<0.000000e+00> : vector<8x32xf32>
    %18 = tpu.matmul %14, %16, %cst_18 {dimension_numbers = #tpu.dot_dimension_numbers<[1], [0], [0], [1], [0, 0, 1, 1], [], []>} : vector<8x16xf32>, vector<16x32xf32>, vector<8x32xf32> -> vector<8x32xf32>
    %19 = vector.broadcast %17 : vector<1x32xf32> to vector<8x32xf32>
    %20 = arith.addf %18, %19 : vector<8x32xf32>
    %cst_19 = arith.constant 0.000000e+00 : f32
    %21 = vector.broadcast %cst_19 : f32 to vector<8x32xf32>
    %22 = arith.maximumf %20, %21 : vector<8x32xf32>
    %c0_20 = arith.constant 0 : index
    %c0_21 = arith.constant 0 : index
    %23 = vector.load %arg8[%c0_20, %c0_21] : memref<32x64xf32, #tpu.memory_space<vmem>>, vector<32x64xf32>
    %c0_22 = arith.constant 0 : index
    %c0_23 = arith.constant 0 : index
    %24 = vector.load %arg9[%c0_22, %c0_23] : memref<1x64xf32, #tpu.memory_space<vmem>>, vector<1x64xf32>
    %cst_24 = arith.constant dense<0.000000e+00> : vector<8x64xf32>
    %25 = tpu.matmul %22, %23, %cst_24 {dimension_numbers = #tpu.dot_dimension_numbers<[1], [0], [0], [1], [0, 0, 1, 1], [], []>} : vector<8x32xf32>, vector<32x64xf32>, vector<8x64xf32> -> vector<8x64xf32>
    %26 = vector.broadcast %24 : vector<1x64xf32> to vector<8x64xf32>
    %27 = arith.addf %25, %26 : vector<8x64xf32>
    %28 = math.absf %27 : vector<8x64xf32>
    %cst_25 = arith.constant 0.000000e+00 : f32
    %29 = vector.broadcast %cst_25 : f32 to vector<8x64xf32>
    %30 = arith.subf %29, %28 : vector<8x64xf32>
    %31 = math.exp %30 : vector<8x64xf32>
    %cst_26 = arith.constant 1.000000e+00 : f32
    %32 = vector.broadcast %cst_26 : f32 to vector<8x64xf32>
    %33 = arith.addf %32, %31 : vector<8x64xf32>
    %cst_27 = arith.constant 1.000000e+00 : f32
    %34 = vector.broadcast %cst_27 : f32 to vector<8x64xf32>
    %35 = arith.divf %34, %33 : vector<8x64xf32>
    %cst_28 = arith.constant 0.000000e+00 : f32
    %36 = vector.broadcast %cst_28 : f32 to vector<8x64xf32>
    %37 = arith.cmpf oge, %27, %36 : vector<8x64xf32>
    %38 = arith.mulf %31, %35 : vector<8x64xf32>
    %39 = arith.select %37, %35, %38 : vector<8x64xi1>, vector<8x64xf32>
    %c0_29 = arith.constant 0 : index
    %c0_30 = arith.constant 0 : index
    %40 = vector.load %arg11[%c0_29, %c0_30] : memref<8x64xf32, #tpu.memory_space<vmem>>, vector<8x64xf32>
    tpu.vector_store %arg11[%c0_29, %c0_30], %39 {strides = array<i32>} : memref<8x64xf32, #tpu.memory_space<vmem>>, vector<8x64xf32>,
    return
  }
  func.func @transform_0(%arg0: i32) -> (i32, i32) {
    %c0_i32 = arith.constant 0 : i32
    %c0_i32_0 = arith.constant 0 : i32
    return %arg0, %c0_i32 : i32, i32
  }
  func.func @transform_1(%arg0: i32) -> (i32, i32) {
    %c0_i32 = arith.constant 0 : i32
    %c0_i32_0 = arith.constant 0 : i32
    %c0_i32_1 = arith.constant 0 : i32
    return %c0_i32, %c0_i32_0 : i32, i32
  }
  func.func @transform_2(%arg0: i32) -> (i32, i32) {
    %c0_i32 = arith.constant 0 : i32
    %c0_i32_0 = arith.constant 0 : i32
    %c0_i32_1 = arith.constant 0 : i32
    return %c0_i32, %c0_i32_0 : i32, i32
  }
  func.func @transform_3(%arg0: i32) -> (i32, i32) {
    %c0_i32 = arith.constant 0 : i32
    %c0_i32_0 = arith.constant 0 : i32
    %c0_i32_1 = arith.constant 0 : i32
    return %c0_i32, %c0_i32_0 : i32, i32
  }
  func.func @transform_4(%arg0: i32) -> (i32, i32) {
    %c0_i32 = arith.constant 0 : i32
    %c0_i32_0 = arith.constant 0 : i32
    %c0_i32_1 = arith.constant 0 : i32
    return %c0_i32, %c0_i32_0 : i32, i32
  }
  func.func @transform_5(%arg0: i32) -> (i32, i32) {
    %c0_i32 = arith.constant 0 : i32
    %c0_i32_0 = arith.constant 0 : i32
    %c0_i32_1 = arith.constant 0 : i32
    return %c0_i32, %c0_i32_0 : i32, i32
  }
  func.func @transform_6(%arg0: i32) -> (i32, i32) {
    %c0_i32 = arith.constant 0 : i32
    %c0_i32_0 = arith.constant 0 : i32
    %c0_i32_1 = arith.constant 0 : i32
    return %c0_i32, %c0_i32_0 : i32, i32
  }
  func.func @transform_7(%arg0: i32) -> (i32, i32) {
    %c0_i32 = arith.constant 0 : i32
    %c0_i32_0 = arith.constant 0 : i32
    %c0_i32_1 = arith.constant 0 : i32
    return %c0_i32, %c0_i32_0 : i32, i32
  }
  func.func @transform_8(%arg0: i32) -> (i32, i32) {
    %c0_i32 = arith.constant 0 : i32
    %c0_i32_0 = arith.constant 0 : i32
    %c0_i32_1 = arith.constant 0 : i32
    return %c0_i32, %c0_i32_0 : i32, i32
  }
  func.func @transform_9(%arg0: i32) -> (i32, i32) {
    %c0_i32 = arith.constant 0 : i32
    %c0_i32_0 = arith.constant 0 : i32
    return %arg0, %c0_i32 : i32, i32
  }
  func.func @transform_10(%arg0: i32) -> (i32, i32) {
    %c0_i32 = arith.constant 0 : i32
    %c0_i32_0 = arith.constant 0 : i32
    return %arg0, %c0_i32 : i32, i32
  }
}

</mosaic_0001>

<llo_original>
// kernel: tpu_custom_call.1
$region0: #{tpu_custom_call.1}
  #allocation0 [shape = 'u32[]', space=smem, size = 0x4, offset = 0x4, fixed_abs, tag = 'smem constant byte address 0x4 - core index']
  #allocation1 [shape = 'u32[72,128]{1,0:T(1,128)}', space=vmem, size = 0x9000, scoped, tag = 'internal scratch']
  %s0 = inlined_call_operand.vmem [shape: f32[8,64], index: 0, kind: input, shape index: {}]
  %s1 = inlined_call_operand.vmem [shape: f32[64,32], index: 1, kind: input, shape index: {}]
  %s2 = inlined_call_operand.vmem [shape: f32[1,32], index: 2, kind: input, shape index: {}]
  %s3 = inlined_call_operand.vmem [shape: f32[32,16], index: 3, kind: input, shape index: {}]
  %s4 = inlined_call_operand.vmem [shape: f32[1,16], index: 4, kind: input, shape index: {}]
  %s5 = inlined_call_operand.vmem [shape: f32[16,32], index: 5, kind: input, shape index: {}]
  %s6 = inlined_call_operand.vmem [shape: f32[1,32], index: 6, kind: input, shape index: {}]
  %s7 = inlined_call_operand.vmem [shape: f32[32,64], index: 7, kind: input, shape index: {}]
  %s8 = inlined_call_operand.vmem [shape: f32[1,64], index: 8, kind: input, shape index: {}]
  %s9 = inlined_call_operand.hbm [shape: f32[8,16], index: 9, kind: output, shape index: {0}]
  %s10 = inlined_call_operand.hbm [shape: f32[8,64], index: 10, kind: output, shape index: {1}]
  %11 = xla_tuple %s9, %s10
  %s12 = sld [smem:[#allocation0]]
  $region54: #{tpu_custom_call.1} parent=0
    _
  %s14 = ssub.s32 1, %s12
  %s15 = scalar_select 0, %s14, %s12
  $region1: #{tpu_custom_call.1} parent=0
    #allocation2 [shape = 'u8[4096]{0}', space=vmem, size = 0x1000, scoped, tag = 'output window, operand 0, single buffered']
    #allocation3 [shape = 's32[1]{0}', space=sflag, size = 0x4, scoped, tag = 'scoped memory for tpu_custom_call.1']
    #allocation4 [shape = 'u8[4096]{0}', space=vmem, size = 0x1000, scoped, tag = 'output window, operand 1, single buffered']
    #allocation5 [shape = 's32[1]{0}', space=sflag, size = 0x4, scoped, tag = 'scoped memory for tpu_custom_call.1']
    %16 = vsyncpa [#allocation3], 0
    %17 = vsyncpa [#allocation5], 0
    // Predicated region
    $region2: #{tpu_custom_call.1} parent=1 // pred_check
      _
    $region3: #{tpu_custom_call.1} parent=1 // pred_check_branch
      %19 = sbr.rel (0) target = $region5
    $region4: #{tpu_custom_call.1} parent=1 // pred_region
      _
    $region5: #{tpu_custom_call.1} parent=1 // pred_fallthru
      _
    // Predicated region
    $region6: #{tpu_custom_call.1} parent=1 // pred_check
      _
    $region7: #{tpu_custom_call.1} parent=1 // pred_check_branch
      %21 = sbr.rel (0) target = $region9
    $region8: #{tpu_custom_call.1} parent=1 // pred_region
      _
    $region9: #{tpu_custom_call.1} parent=1 // pred_fallthru
      _
    // Predicated region
    $region10: #{tpu_custom_call.1} parent=1 // pred_check
      _
    $region11: #{tpu_custom_call.1} parent=1 // pred_check_branch
      %23 = sbr.rel (0) target = $region13
    $region12: #{tpu_custom_call.1} parent=1 // pred_region
      _
    $region13: #{tpu_custom_call.1} parent=1 // pred_fallthru
      _
    // Predicated region
    $region14: #{tpu_custom_call.1} parent=1 // pred_check
      _
    $region15: #{tpu_custom_call.1} parent=1 // pred_check_branch
      %25 = sbr.rel (0) target = $region17
    $region16: #{tpu_custom_call.1} parent=1 // pred_region
      _
    $region17: #{tpu_custom_call.1} parent=1 // pred_fallthru
      _
    // Predicated region
    $region18: #{tpu_custom_call.1} parent=1 // pred_check
      _
    $region19: #{tpu_custom_call.1} parent=1 // pred_check_branch
      %27 = sbr.rel (0) target = $region21
    $region20: #{tpu_custom_call.1} parent=1 // pred_region
      _
    $region21: #{tpu_custom_call.1} parent=1 // pred_fallthru
      _
    // Predicated region
    $region22: #{tpu_custom_call.1} parent=1 // pred_check
      _
    $region23: #{tpu_custom_call.1} parent=1 // pred_check_branch
      %29 = sbr.rel (0) target = $region25
    $region24: #{tpu_custom_call.1} parent=1 // pred_region
      _
    $region25: #{tpu_custom_call.1} parent=1 // pred_fallthru
      _
    // Predicated region
    $region26: #{tpu_custom_call.1} parent=1 // pred_check
      _
    $region27: #{tpu_custom_call.1} parent=1 // pred_check_branch
      %31 = sbr.rel (0) target = $region29
    $region28: #{tpu_custom_call.1} parent=1 // pred_region
      _
    $region29: #{tpu_custom_call.1} parent=1 // pred_fallthru
      _
    // Predicated region
    $region30: #{tpu_custom_call.1} parent=1 // pred_check
      _
    $region31: #{tpu_custom_call.1} parent=1 // pred_check_branch
      %33 = sbr.rel (0) target = $region33
    $region32: #{tpu_custom_call.1} parent=1 // pred_region
      _
    $region33: #{tpu_custom_call.1} parent=1 // pred_fallthru
      _
    // Predicated region
    $region34: #{tpu_custom_call.1} parent=1 // pred_check
      _
    $region35: #{tpu_custom_call.1} parent=1 // pred_check_branch
      %35 = sbr.rel (0) target = $region37
    $region36: #{tpu_custom_call.1} parent=1 // pred_region
      _
    $region37: #{tpu_custom_call.1} parent=1 // pred_fallthru
      _
    %v36 = vld [vmem:[%s0] sm:$0xff]
    %v37 = vld [vmem:[%s1] sm:$0xff]
    %v38 = vld [vmem:[%s1 + $0x8] sm:$0xff]
    %v39 = vld [vmem:[%s1 + $0x10] sm:$0xff]
    %v40 = vld [vmem:[%s1 + $0x18] sm:$0xff]
    %v41 = vld [vmem:[%s1 + $0x20] sm:$0xff]
    %v42 = vld [vmem:[%s1 + $0x28] sm:$0xff]
    %v43 = vld [vmem:[%s1 + $0x30] sm:$0xff]
    %v44 = vld [vmem:[%s1 + $0x38] sm:$0xff]
    %v45 = vld [vmem:[%s2] sm:$0x1]
    %v47 = vperm.slane %v45, 0
    %vm49 = vcmask 523264
    %v51 = vsel %vm49, %v36, 0
    %53 = vmatpush.msra.mxu0 0.0
    %54 = vmatpush.msra.mxu0 0.0
    %55 = vmatpush.msra.mxu0 0.0
    %56 = vmatpush.msra.mxu0 0.0
    %57 = vmatpush.msra.mxu0 0.0
    %58 = vmatpush.msra.mxu0 0.0
    %59 = vmatpush.msra.mxu0 0.0
    %60 = vmatpush.msra.mxu0 0.0
    %61 = vmatpush.msra.mxu0 %v44
    %62 = vmatpush.msra.mxu0 %v43
    %63 = vmatpush.msra.mxu0 %v42
    %64 = vmatpush.msra.mxu0 %v41
    %65 = vmatpush.msra.mxu0 %v40
    %66 = vmatpush.msra.mxu0 %v39
    %67 = vmatpush.msra.mxu0 %v38
    %68 = vmatpush.msra.mxu0 %v37
    %69 = vmatmul.f32.gmra.mxu0 %v51
    %v70 = vpop.f32.mrf.mxu0
    %v71 = vadd.f32 %v47, %v70
    %72 = vdwg.mxu0
    %v73 = vmax.f32 %v71, 0.0
    %v74 = vld [vmem:[%s3] sm:$0xff]
    %v75 = vld [vmem:[%s3 + $0x8] sm:$0xff]
    %v76 = vld [vmem:[%s3 + $0x10] sm:$0xff]
    %v77 = vld [vmem:[%s3 + $0x18] sm:$0xff]
    %v78 = vld [vmem:[%s4] sm:$0x1]
    %v80 = vperm.slane %v78, 0
    %vm82 = vcmask 261120
    %v84 = vsel %vm82, %v73, 0
    %86 = vmatpush.msra.mxu0 0.0
    %87 = vmatpush.msra.mxu0 0.0
    %88 = vmatpush.msra.mxu0 0.0
    %89 = vmatpush.msra.mxu0 0.0
    %90 = vmatpush.msra.mxu0 0.0
    %91 = vmatpush.msra.mxu0 0.0
    %92 = vmatpush.msra.mxu0 0.0
    %93 = vmatpush.msra.mxu0 0.0
    %94 = vmatpush.msra.mxu0 0.0
    %95 = vmatpush.msra.mxu0 0.0
    %96 = vmatpush.msra.mxu0 0.0
    %97 = vmatpush.msra.mxu0 0.0
    %98 = vmatpush.msra.mxu0 %v77
    %99 = vmatpush.msra.mxu0 %v76
    %100 = vmatpush.msra.mxu0 %v75
    %101 = vmatpush.msra.mxu0 %v74
    %102 = vmatmul.f32.gmra.mxu0 %v84
    %v103 = vpop.f32.mrf.mxu0
    %v104 = vadd.f32 %v80, %v103
    %105 = vdwg.mxu0
    %v106 = vmax.f32 %v104, 0.0
    %vm107 = vcmask 130048
    %108 = vst.msk [vmem:[#allocation2] sm:$0xff] %vm107, %v106
    %v109 = vld [vmem:[%s5] sm:$0xff]
    %v110 = vld [vmem:[%s5 + $0x8] sm:$0xff]
    %v111 = vld [vmem:[%s6] sm:$0x1]
    %v113 = vperm.slane %v111, 0
    %v116 = vsel %vm107, %v106, 0
    %118 = vmatpush.msra.mxu0 0.0
    %119 = vmatpush.msra.mxu0 0.0
    %120 = vmatpush.msra.mxu0 0.0
    %121 = vmatpush.msra.mxu0 0.0
    %122 = vmatpush.msra.mxu0 0.0
    %123 = vmatpush.msra.mxu0 0.0
    %124 = vmatpush.msra.mxu0 0.0
    %125 = vmatpush.msra.mxu0 0.0
    %126 = vmatpush.msra.mxu0 0.0
    %127 = vmatpush.msra.mxu0 0.0
    %128 = vmatpush.msra.mxu0 0.0
    %129 = vmatpush.msra.mxu0 0.0
    %130 = vmatpush.msra.mxu0 0.0
    %131 = vmatpush.msra.mxu0 0.0
    %132 = vmatpush.msra.mxu0 %v110
    %133 = vmatpush.msra.mxu0 %v109
    %134 = vmatmul.f32.gmra.mxu0 %v116
    %v135 = vpop.f32.mrf.mxu0
    %v136 = vadd.f32 %v113, %v135
    %137 = vdwg.mxu0
    %v138 = vmax.f32 %v136, 0.0
    %v139 = vld [vmem:[%s7] sm:$0xff]
    %v140 = vld [vmem:[%s7 + $0x8] sm:$0xff]
    %v141 = vld [vmem:[%s7 + $0x10] sm:$0xff]
    %v142 = vld [vmem:[%s7 + $0x18] sm:$0xff]
    %v143 = vld [vmem:[%s8] sm:$0x1]
    %v145 = vperm.slane %v143, 0
    %v148 = vsel %vm82, %v138, 0
    %150 = vmatpush.msra.mxu0 0.0
    %151 = vmatpush.msra.mxu0 0.0
    %152 = vmatpush.msra.mxu0 0.0
    %153 = vmatpush.msra.mxu0 0.0
    %154 = vmatpush.msra.mxu0 0.0
    %155 = vmatpush.msra.mxu0 0.0
    %156 = vmatpush.msra.mxu0 0.0
    %157 = vmatpush.msra.mxu0 0.0
    %158 = vmatpush.msra.mxu0 0.0
    %159 = vmatpush.msra.mxu0 0.0
    %160 = vmatpush.msra.mxu0 0.0
    %161 = vmatpush.msra.mxu0 0.0
    %162 = vmatpush.msra.mxu0 %v142
    %163 = vmatpush.msra.mxu0 %v141
    %164 = vmatpush.msra.mxu0 %v140
    %165 = vmatpush.msra.mxu0 %v139
    %166 = vmatmul.f32.gmra.mxu0 %v148
    %v167 = vpop.f32.mrf.mxu0
    %v168 = vadd.f32 %v145, %v167
    %169 = vdwg.mxu0
    %v170 = vand.u32 2147483647, %v168
    %v171 = vsub.f32 0.0, %v170
    %v172 = vmul.f32 %v171, 1.442695
    %v173 = vpow.pop %v172
    %v174 = vadd.f32 %v173, 1.0
    %v175 = vrcp.pop %v174
    %v176 = vmul.f32 %v174, %v175
    %v177 = vsub.f32 1.0, %v176
    %v178 = vmul.f32 %v175, %v177
    %v179 = vadd.f32 %v175, %v178
    %vm180 = vweird.f32 %v174
    %vm181 = vweird.f32 %v175
    %vm182 = vmor %vm180, %vm181
    %v183 = vsel %vm182, %v175, %v179
    %v184 = vand.u32 2147483647, %v174
    %vm185 = vcmp.eq.f32.partialorder %v184, 8.507059e+37
    %v186 = vand.u32 %v174, 2147483648
    %v187 = vor.u32 1.1754944e-38, %v186
    %v188 = vsel %vm185, %v187, %v183
    %v189 = vmul.f32 1.0, %v188
    %vm190 = vcmp.ge.f32.partialorder %v168, 0.0
    %v191 = vmul.f32 %v173, %v189
    %v192 = vsel %vm190, %v189, %v191
    %193 = vst.msk [vmem:[#allocation4] sm:$0xff] %vm49, %v192
    // Predicated region
    $region38: #{tpu_custom_call.1} parent=1 // pred_check
      _
    $region39: #{tpu_custom_call.1} parent=1 // pred_check_branch
      %195 = sbr.rel (0) target = $region41
    $region40: #{tpu_custom_call.1} parent=1 // pred_region
      %197 = vsyncadd [#allocation3], 0
      %s199 = sshll.u32 [#allocation2], 4
      %s200 = int_to_ptr.vmem [resolvable:$true] %s199
      %s201 = sshll.u32 %s9, 4
      %s202 = int_to_ptr.hbm [resolvable:$true] %s201
      %204 = dma.vmem_to_hbm [thread:$0]  %s200, 128, %s202, [#allocation3]
    $region41: #{tpu_custom_call.1} parent=1 // pred_fallthru
      _
    // Predicated region
    $region42: #{tpu_custom_call.1} parent=1 // pred_check
      _
    $region43: #{tpu_custom_call.1} parent=1 // pred_check_branch
      %206 = sbr.rel (0) target = $region45
    $region44: #{tpu_custom_call.1} parent=1 // pred_region
      %208 = vsyncadd [#allocation5], 0
      %s210 = sshll.u32 [#allocation4], 4
      %s211 = int_to_ptr.vmem [resolvable:$true] %s210
      %s212 = sshll.u32 %s10, 4
      %s213 = int_to_ptr.hbm [resolvable:$true] %s212
      %215 = dma.vmem_to_hbm [thread:$0]  %s211, 128, %s213, [#allocation5]
    $region45: #{tpu_custom_call.1} parent=1 // pred_fallthru
      _
    // Predicated region
    $region46: #{tpu_custom_call.1} parent=1 // pred_check
      _
    $region47: #{tpu_custom_call.1} parent=1 // pred_check_branch
      %217 = sbr.rel (0) target = $region49
    $region48: #{tpu_custom_call.1} parent=1 // pred_region
      %219 = dma.done [#allocation3], 128
    $region49: #{tpu_custom_call.1} parent=1 // pred_fallthru
      _
    // Predicated region
    $region50: #{tpu_custom_call.1} parent=1 // pred_check
      _
    $region51: #{tpu_custom_call.1} parent=1 // pred_check_branch
      %221 = sbr.rel (0) target = $region53
    $region52: #{tpu_custom_call.1} parent=1 // pred_region
      %223 = dma.done [#allocation5], 128
    $region53: #{tpu_custom_call.1} parent=1 // pred_fallthru
      _
    %224 = vsyncpa [#allocation3], 1
    %225 = vsyncpa [#allocation5], 1

</llo_original>
